<compile_context>
chip_gen: v5e
topology: v5e:2x2
jax: 0.10.0
libtpu: 0.0.40
codegen_flags: <defaults>
</compile_context>

<pallas_src>
import numpy as np
import jax
import jax.numpy as jnp
from jax.experimental import pallas as pl
from jax.experimental.pallas import tpu as pltpu

UP = 7                      # nn.Upsample(scale_factor=7), mode='nearest'
POOL = 32                   # nn.AvgPool2d(kernel_size=32)
LOGIT_SCALE = 100.0         # CLIP's exp(logit_scale) at convergence (~100)
LOSS_SCALE = LOGIT_SCALE / 100.0   # forward divides logits by 100; fuse into one mul
EPS = 1e-12                 # avoids inf/NaN on an all-zero feature row


# ----------------------------------------------------------------------------
# Trace-time glue: 1-D linear operator equivalent to nearest-upsample(up) then
# avgpool(pool) along one spatial axis:  out = W @ x.
# ----------------------------------------------------------------------------
def _resample_matrix(in_size, up, pool):
    out_size = (in_size * up) // pool
    j = np.arange(out_size * pool)
    src = j // up      # nearest upsample: upsampled[j] = x[j // up]
    dst = j // pool    # avgpool group
    W = np.zeros((out_size, in_size), dtype=np.float32)
    np.add.at(W, (dst, src), 1.0 / pool)
    return jnp.asarray(W)


def fold_resample_into_weight(w_img, C, H, W):
    """Fold Upsample(7) + AvgPool2d(32) into the image projection weight.

    flatten(resample(x)) @ w_img == flatten(x) @ w_folded with
    w_folded[(c,h,w), d] = sum_{i,j} Wh[i,h] * Ww[j,w] * w_img[(c,i,j), d].
    """
    Wh = _resample_matrix(H, UP, POOL)      # (Ho, H)
    Ww = _resample_matrix(W, UP, POOL)      # (Wo, W)
    Ho, Wo = Wh.shape[0], Ww.shape[0]
    D = w_img.shape[-1]
    w4 = w_img.reshape(C, Ho, Wo, D)
    w_folded = jnp.einsum("ih,jw,cijd->chwd", Wh, Ww, w4,
                          precision=jax.lax.Precision.HIGHEST)
    return w_folded.reshape(C * H * W, D)   # (C*H*W, D), K lane-aligned


# ----------------------------------------------------------------------------
# Fused CLIP head kernel: image & text projections, L2 normalization, logit
# matrix, and the scalar loss mean(1 - logits/100) — all in one pallas_call.
# ----------------------------------------------------------------------------
def _clip_loss_kernel(img_ref, wimg_ref, txt_ref, wtxt_ref, o_ref):
    img_f = jnp.dot(img_ref[...], wimg_ref[...],
                    preferred_element_type=jnp.float32)            # (N, D)
    txt_f = jnp.dot(txt_ref[...], wtxt_ref[...],
                    preferred_element_type=jnp.float32)            # (N, D)
    img_n = img_f * jax.lax.rsqrt(
        jnp.sum(img_f * img_f, axis=-1, keepdims=True) + EPS)
    txt_n = txt_f * jax.lax.rsqrt(
        jnp.sum(txt_f * txt_f, axis=-1, keepdims=True) + EPS)
    # logits_per_image = LOGIT_SCALE * img_n @ txt_n.T  (contract over D)
    sim = jax.lax.dot_general(img_n, txt_n, (((1,), (1,)), ((), ())),
                              preferred_element_type=jnp.float32)  # (N, N)
    # loss = mean(1 - LOGIT_SCALE*sim/100) ; LOSS_SCALE fuses the two constants.
    o_ref[0] = jnp.mean(1.0 - LOSS_SCALE * sim)


def clip_loss(image, text, params):
    """Full CLIPLoss.forward: scalar float32."""
    N, C, H, W = image.shape
    img_flat = image.reshape(N, C * H * W)                  # (N, 3072) lane-dense

    # Fold the (linear) upsample+avgpool into the projection weight (trace time).
    w_img = fold_resample_into_weight(params["w_img"], C, H, W)   # (C*H*W, D)

    # glue: token embedding lookup + mean pool (synthetic text encoder trunk);
    # tiny gather/mean left to XLA per review.
    txt_emb = jnp.take(params["tok_embed"], text, axis=0)   # (N, L, E)
    txt_pool = jnp.mean(txt_emb, axis=1)                    # (N, E)
    w_txt = params["w_txt"]                                 # (E, D)

    out = pl.pallas_call(
        _clip_loss_kernel,
        out_shape=jax.ShapeDtypeStruct((1,), jnp.float32),
        in_specs=[
            pl.BlockSpec(memory_space=pltpu.MemorySpace.VMEM),
            pl.BlockSpec(memory_space=pltpu.MemorySpace.VMEM),
            pl.BlockSpec(memory_space=pltpu.MemorySpace.VMEM),
            pl.BlockSpec(memory_space=pltpu.MemorySpace.VMEM),
        ],
        out_specs=pl.BlockSpec(memory_space=pltpu.MemorySpace.SMEM),
    )(img_flat, w_img, txt_pool, w_txt)
    return out[0]


# ----------------------------------------------------------------------------
# Pure-JAX reference (explicit upsample + avgpool path) for validation.
# ----------------------------------------------------------------------------
def _reference_loss(image, text, params):
    hp = jax.lax.Precision.HIGHEST
    N, C, H, W = image.shape
    up = jnp.repeat(jnp.repeat(image, UP, axis=2), UP, axis=3)
    Ho, Wo = (H * UP) // POOL, (W * UP) // POOL
    pooled = up.reshape(N, C, Ho, POOL, Wo, POOL).mean(axis=(3, 5))
    img_f = jnp.dot(pooled.reshape(N, -1), params["w_img"], precision=hp)
    txt_emb = jnp.take(params["tok_embed"], text, axis=0)
    txt_f = jnp.dot(jnp.mean(txt_emb, axis=1), params["w_txt"], precision=hp)
    img_n = img_f / jnp.linalg.norm(img_f, axis=-1, keepdims=True)
    txt_n = txt_f / jnp.linalg.norm(txt_f, axis=-1, keepdims=True)
    logits = LOGIT_SCALE * jnp.dot(img_n, txt_n.T, precision=hp)
    return jnp.mean(1.0 - logits / 100.0)


if __name__ == "__main__":
    key = jax.random.PRNGKey(0)
    k_img, k_txt, k_w1, k_w2, k_emb = jax.random.split(key, 5)

    # Small, forward-consistent shapes: 32x32 image * 7 / 32 -> 7x7 pooled.
    # E = D = 128 keeps every matmul lane-aligned.
    N, C, H, W = 2, 3, 32, 32
    L, V, E, D = 8, 64, 128, 128
    Ho = (H * UP) // POOL
    Wo = (W * UP) // POOL

    image = jax.random.normal(k_img, (N, C, H, W), dtype=jnp.float32)
    text = jax.random.randint(k_txt, (N, L), 0, V, dtype=jnp.int32)

    params = {
        "w_img": 0.02 * jax.random.normal(k_w1, (C * Ho * Wo, D), dtype=jnp.float32),
        "w_txt": 0.02 * jax.random.normal(k_w2, (E, D), dtype=jnp.float32),
        "tok_embed": 0.02 * jax.random.normal(k_emb, (V, E), dtype=jnp.float32),
    }

    loss = clip_loss(image, text, params)
    jax.block_until_ready(loss)

    ref = _reference_loss(image, text, params)
    np.testing.assert_allclose(np.asarray(loss), np.asarray(ref),
                               rtol=1e-2, atol=1e-2)
    print("KERNEL_OK")
</pallas_src>

<mosaic_0001>
module attributes {stable_mosaic.version = 11 : i64} {
  func.func @_clip_loss_kernel(%arg0: memref<2x3072xf32, #tpu.memory_space<vmem>>, %arg1: memref<3072x128xf32, #tpu.memory_space<vmem>>, %arg2: memref<2x128xf32, #tpu.memory_space<vmem>>, %arg3: memref<128x128xf32, #tpu.memory_space<vmem>>, %arg4: memref<1xf32, #tpu.memory_space<smem>>) attributes {dimension_semantics = [], scalar_prefetch = 0 : i64, scratch_operands = 0 : i64, tpu.core_type = #tpu.core_type<tc>} {
    %c0 = arith.constant 0 : index
    %c0_0 = arith.constant 0 : index
    %0 = vector.load %arg0[%c0, %c0_0] : memref<2x3072xf32, #tpu.memory_space<vmem>>, vector<2x3072xf32>
    %c0_1 = arith.constant 0 : index
    %c0_2 = arith.constant 0 : index
    %1 = vector.load %arg1[%c0_1, %c0_2] : memref<3072x128xf32, #tpu.memory_space<vmem>>, vector<3072x128xf32>
    %cst = arith.constant dense<0.000000e+00> : vector<2x128xf32>
    %2 = tpu.matmul %0, %1, %cst {dimension_numbers = #tpu.dot_dimension_numbers<[1], [0], [0], [1], [0, 0, 1, 1], [], []>} : vector<2x3072xf32>, vector<3072x128xf32>, vector<2x128xf32> -> vector<2x128xf32>
    %c0_3 = arith.constant 0 : index
    %c0_4 = arith.constant 0 : index
    %3 = vector.load %arg2[%c0_3, %c0_4] : memref<2x128xf32, #tpu.memory_space<vmem>>, vector<2x128xf32>
    %c0_5 = arith.constant 0 : index
    %c0_6 = arith.constant 0 : index
    %4 = vector.load %arg3[%c0_5, %c0_6] : memref<128x128xf32, #tpu.memory_space<vmem>>, vector<128x128xf32>
    %cst_7 = arith.constant dense<0.000000e+00> : vector<2x128xf32>
    %5 = tpu.matmul %3, %4, %cst_7 {dimension_numbers = #tpu.dot_dimension_numbers<[1], [0], [0], [1], [0, 0, 1, 1], [], []>} : vector<2x128xf32>, vector<128x128xf32>, vector<2x128xf32> -> vector<2x128xf32>
    %6 = arith.mulf %2, %2 : vector<2x128xf32>
    %cst_8 = arith.constant dense<0.000000e+00> : vector<2xf32>
    %7 = vector.multi_reduction <add>, %6, %cst_8 [1] : vector<2x128xf32> to vector<2xf32>
    %8 = vector.shape_cast %7 : vector<2xf32> to vector<2x1xf32>
    %cst_9 = arith.constant 9.99999996E-13 : f32
    %9 = vector.broadcast %cst_9 : f32 to vector<2x1xf32>
    %10 = arith.addf %8, %9 : vector<2x1xf32>
    %11 = math.rsqrt %10 : vector<2x1xf32>
    %12 = vector.broadcast %11 : vector<2x1xf32> to vector<2x128xf32>
    %13 = arith.mulf %2, %12 : vector<2x128xf32>
    %14 = arith.mulf %5, %5 : vector<2x128xf32>
    %cst_10 = arith.constant dense<0.000000e+00> : vector<2xf32>
    %15 = vector.multi_reduction <add>, %14, %cst_10 [1] : vector<2x128xf32> to vector<2xf32>
    %16 = vector.shape_cast %15 : vector<2xf32> to vector<2x1xf32>
    %cst_11 = arith.constant 9.99999996E-13 : f32
    %17 = vector.broadcast %cst_11 : f32 to vector<2x1xf32>
    %18 = arith.addf %16, %17 : vector<2x1xf32>
    %19 = math.rsqrt %18 : vector<2x1xf32>
    %20 = vector.broadcast %19 : vector<2x1xf32> to vector<2x128xf32>
    %21 = arith.mulf %5, %20 : vector<2x128xf32>
    %cst_12 = arith.constant dense<0.000000e+00> : vector<2x2xf32>
    %22 = tpu.matmul %13, %21, %cst_12 {dimension_numbers = #tpu.dot_dimension_numbers<[1], [1], [0], [0], [0, 0, 1, 0], [], []>} : vector<2x128xf32>, vector<2x128xf32>, vector<2x2xf32> -> vector<2x2xf32>
    %cst_13 = arith.constant 1.000000e+00 : f32
    %23 = vector.broadcast %cst_13 : f32 to vector<2x2xf32>
    %24 = arith.mulf %23, %22 : vector<2x2xf32>
    %cst_14 = arith.constant 1.000000e+00 : f32
    %25 = vector.broadcast %cst_14 : f32 to vector<2x2xf32>
    %26 = arith.subf %25, %24 : vector<2x2xf32>
    %27 = vector.shape_cast %26 : vector<2x2xf32> to vector<1x2x2xf32>
    %cst_15 = arith.constant dense<0.000000e+00> : vector<1xf32>
    %28 = vector.multi_reduction <add>, %27, %cst_15 [1, 2] : vector<1x2x2xf32> to vector<1xf32>
    %29 = vector.shape_cast %28 : vector<1xf32> to vector<1x1x1xf32>
    %30 = vector.extract %29[0, 0, 0] : f32 from vector<1x1x1xf32>
    %cst_16 = arith.constant 4.000000e+00 : f32
    %31 = arith.divf %30, %cst_16 : f32
    %c0_17 = arith.constant 0 : index
    %32 = memref.load %arg4[%c0_17] : memref<1xf32, #tpu.memory_space<smem>>
    memref.store %31, %arg4[%c0_17] : memref<1xf32, #tpu.memory_space<smem>>
    return
  }
}

</mosaic_0001>

<llo_original>
// kernel: tpu_custom_call.1
$region0: #{tpu_custom_call.1}
  #allocation0 [shape = 'u32[]', space=smem, size = 0x4, offset = 0x4, fixed_abs, tag = 'smem constant byte address 0x4 - core index']
  #allocation1 [shape = 'u32[72,128]{1,0:T(1,128)}', space=vmem, size = 0x9000, scoped, tag = 'internal scratch']
  %s0 = inlined_call_operand.hbm [shape: f32[2,3072], index: 0, kind: input, shape index: {}]
  %s1 = inlined_call_operand.hbm [shape: f32[3072,128], index: 1, kind: input, shape index: {}]
  %s2 = inlined_call_operand.hbm [shape: f32[2,128], index: 2, kind: input, shape index: {}]
  %s3 = inlined_call_operand.hbm [shape: f32[128,128], index: 3, kind: input, shape index: {}]
  %s4 = inlined_call_operand.hbm [shape: f32[1], index: 4, kind: output, shape index: {}]
  %s5 = sld [smem:[#allocation0]]
  $region42: #{tpu_custom_call.1} parent=0
    _
  %s7 = ssub.s32 1, %s5
  %s8 = scalar_select 0, %s7, %s5
  $region1: #{tpu_custom_call.1} parent=0
    #allocation2 [shape = 'u8[24576]{0}', space=vmem, size = 0x6000, scoped, tag = 'input window, operand 0, single buffered']
    #allocation3 [shape = 's32[1]{0}', space=sflag, size = 0x4, scoped, tag = 'scoped memory for tpu_custom_call.1']
    #allocation4 [shape = 's32[1]{0}', space=sflag, size = 0x4, scoped, tag = 'scoped memory for tpu_custom_call.1']
    #allocation5 [shape = 'u8[1572864]{0}', space=vmem, size = 0x180000, scoped, tag = 'input window, operand 1, single buffered']
    #allocation6 [shape = 's32[1]{0}', space=sflag, size = 0x4, scoped, tag = 'scoped memory for tpu_custom_call.1']
    #allocation7 [shape = 'u8[1024]{0}', space=vmem, size = 0x400, scoped, tag = 'input window, operand 2, single buffered']
    #allocation8 [shape = 'u8[65536]{0}', space=vmem, size = 0x10000, scoped, tag = 'input window, operand 3, single buffered']
    #allocation9 [shape = 's32[1]{0}', space=sflag, size = 0x4, scoped, tag = 'scoped memory for tpu_custom_call.1']
    #allocation10 [shape = 'u8[512]{0}', space=smem, size = 0x200, scoped, tag = 'output window, operand 0, single buffered']
    %9 = vsyncpa [#allocation3], 0
    %10 = vsyncpa [#allocation6], 0
    %11 = vsyncpa [#allocation9], 0
    %12 = vsyncpa [#allocation4], 0
    // Predicated region
    $region2: #{tpu_custom_call.1} parent=1 // pred_check
      _
    $region3: #{tpu_custom_call.1} parent=1 // pred_check_branch
      %14 = sbr.rel (0) target = $region5
    $region4: #{tpu_custom_call.1} parent=1 // pred_region
      %16 = vsyncadd [#allocation3], 0
      %s18 = sshll.u32 %s0, 4
      %s19 = int_to_ptr.hbm [resolvable:$true] %s18
      %s20 = sshll.u32 [#allocation2], 4
      %s21 = int_to_ptr.vmem [resolvable:$true] %s20
      %23 = dma.hbm_to_vmem [thread:$0]  %s19, 768, %s21, [#allocation3]
    $region5: #{tpu_custom_call.1} parent=1 // pred_fallthru
      _
    // Predicated region
    $region6: #{tpu_custom_call.1} parent=1 // pred_check
      _
    $region7: #{tpu_custom_call.1} parent=1 // pred_check_branch
      %25 = sbr.rel (0) target = $region9
    $region8: #{tpu_custom_call.1} parent=1 // pred_region
      %27 = vsyncadd [#allocation6], 0
      %s28 = sshll.u32 %s1, 4
      %s29 = int_to_ptr.hbm [resolvable:$true] %s28
      %s30 = sshll.u32 [#allocation5], 4
      %s31 = int_to_ptr.vmem [resolvable:$true] %s30
      %36 = dma.hbm_to_vmem [thread:$0]  %s29, 49152, %s31, [#allocation6], 128, 128, 8
    $region9: #{tpu_custom_call.1} parent=1 // pred_fallthru
      _
    // Predicated region
    $region10: #{tpu_custom_call.1} parent=1 // pred_check
      _
    $region11: #{tpu_custom_call.1} parent=1 // pred_check_branch
      %38 = sbr.rel (0) target = $region13
    $region12: #{tpu_custom_call.1} parent=1 // pred_region
      %40 = vsyncadd [#allocation6], 0
      %s42 = sshll.u32 %s2, 4
      %s43 = int_to_ptr.hbm [resolvable:$true] %s42
      %s44 = sshll.u32 [#allocation7], 4
      %s45 = int_to_ptr.vmem [resolvable:$true] %s44
      %47 = dma.hbm_to_vmem [thread:$0]  %s43, 32, %s45, [#allocation6]
    $region13: #{tpu_custom_call.1} parent=1 // pred_fallthru
      _
    // Predicated region
    $region14: #{tpu_custom_call.1} parent=1 // pred_check
      _
    $region15: #{tpu_custom_call.1} parent=1 // pred_check_branch
      %49 = sbr.rel (0) target = $region17
    $region16: #{tpu_custom_call.1} parent=1 // pred_region
      %51 = vsyncadd [#allocation9], 0
      %s52 = sshll.u32 %s3, 4
      %s53 = int_to_ptr.hbm [resolvable:$true] %s52
      %s54 = sshll.u32 [#allocation8], 4
      %s55 = int_to_ptr.vmem [resolvable:$true] %s54
      %60 = dma.hbm_to_vmem [thread:$0]  %s53, 2048, %s55, [#allocation9], 128, 128, 8
    $region17: #{tpu_custom_call.1} parent=1 // pred_fallthru
      _
    // Predicated region
    $region18: #{tpu_custom_call.1} parent=1 // pred_check
      _
    $region19: #{tpu_custom_call.1} parent=1 // pred_check_branch
      %62 = sbr.rel (0) target = $region21
    $region20: #{tpu_custom_call.1} parent=1 // pred_region
      %64 = dma.done [#allocation3], 768
    $region21: #{tpu_custom_call.1} parent=1 // pred_fallthru
      _
    // Predicated region
    $region22: #{tpu_custom_call.1} parent=1 // pred_check
      _
    $region23: #{tpu_custom_call.1} parent=1 // pred_check_branch
      %66 = sbr.rel (0) target = $region25
    $region24: #{tpu_custom_call.1} parent=1 // pred_region
      %68 = dma.done [#allocation6], 49152
    $region25: #{tpu_custom_call.1} parent=1 // pred_fallthru
      _
    // Predicated region
    $region26: #{tpu_custom_call.1} parent=1 // pred_check
      _
    $region27: #{tpu_custom_call.1} parent=1 // pred_check_branch
      %70 = sbr.rel (0) target = $region29
    $region28: #{tpu_custom_call.1} parent=1 // pred_region
      %72 = dma.done [#allocation6], 32
    $region29: #{tpu_custom_call.1} parent=1 // pred_fallthru
      _
    // Predicated region
    $region30: #{tpu_custom_call.1} parent=1 // pred_check
      _
    $region31: #{tpu_custom_call.1} parent=1 // pred_check_branch
      %74 = sbr.rel (0) target = $region33
    $region32: #{tpu_custom_call.1} parent=1 // pred_region
      %76 = dma.done [#allocation9], 2048
    $region33: #{tpu_custom_call.1} parent=1 // pred_fallthru
      _
    %v77 = vld [vmem:[#allocation2] sm:$0xff]
    %v78 = vld [vmem:[#allocation2 + $0x8] sm:$0xff]
    %v79 = vld [vmem:[#allocation2 + $0x10] sm:$0xff]
    %v80 = vld [vmem:[#allocation2 + $0x18] sm:$0xff]
    %v81 = vld [vmem:[#allocation2 + $0x20] sm:$0xff]
    %v82 = vld [vmem:[#allocation2 + $0x28] sm:$0xff]
    %v83 = vld [vmem:[#allocation5] sm:$0xff]
    %v84 = vld [vmem:[#allocation5 + $0x8] sm:$0xff]
    %v85 = vld [vmem:[#allocation5 + $0x10] sm:$0xff]
    %v86 = vld [vmem:[#allocation5 + $0x18] sm:$0xff]
    %v87 = vld [vmem:[#allocation5 + $0x20] sm:$0xff]
    %v88 = vld [vmem:[#allocation5 + $0x28] sm:$0xff]
    %v89 = vld [vmem:[#allocation5 + $0x30] sm:$0xff]
    %v90 = vld [vmem:[#allocation5 + $0x38] sm:$0xff]
    %v91 = vld [vmem:[#allocation5 + $0x40] sm:$0xff]
    %v92 = vld [vmem:[#allocation5 + $0x48] sm:$0xff]
    %v93 = vld [vmem:[#allocation5 + $0x50] sm:$0xff]
    %v94 = vld [vmem:[#allocation5 + $0x58] sm:$0xff]
    %v95 = vld [vmem:[#allocation5 + $0x60] sm:$0xff]
    %v96 = vld [vmem:[#allocation5 + $0x68] sm:$0xff]
    %v97 = vld [vmem:[#allocation5 + $0x70] sm:$0xff]
    %v98 = vld [vmem:[#allocation5 + $0x78] sm:$0xff]
    %v99 = vld [vmem:[#allocation5 + $0x80] sm:$0xff]
    %v100 = vld [vmem:[#allocation5 + $0x88] sm:$0xff]
    %v101 = vld [vmem:[#allocation5 + $0x90] sm:$0xff]
    %v102 = vld [vmem:[#allocation5 + $0x98] sm:$0xff]
    %v103 = vld [vmem:[#allocation5 + $0xa0] sm:$0xff]
    %v104 = vld [vmem:[#allocation5 + $0xa8] sm:$0xff]
    %v105 = vld [vmem:[#allocation5 + $0xb0] sm:$0xff]
    %v106 = vld [vmem:[#allocation5 + $0xb8] sm:$0xff]
    %v107 = vld [vmem:[#allocation5 + $0xc0] sm:$0xff]
    %v108 = vld [vmem:[#allocation5 + $0xc8] sm:$0xff]
    %v109 = vld [vmem:[#allocation5 + $0xd0] sm:$0xff]
    %v110 = vld [vmem:[#allocation5 + $0xd8] sm:$0xff]
    %v111 = vld [vmem:[#allocation5 + $0xe0] sm:$0xff]
    %v112 = vld [vmem:[#allocation5 + $0xe8] sm:$0xff]
    %v113 = vld [vmem:[#allocation5 + $0xf0] sm:$0xff]
    %v114 = vld [vmem:[#allocation5 + $0xf8] sm:$0xff]
    %v115 = vld [vmem:[#allocation5 + $0x100] sm:$0xff]
    %v116 = vld [vmem:[#allocation5 + $0x108] sm:$0xff]
    %v117 = vld [vmem:[#allocation5 + $0x110] sm:$0xff]
    %v118 = vld [vmem:[#allocation5 + $0x118] sm:$0xff]
    %v119 = vld [vmem:[#allocation5 + $0x120] sm:$0xff]
    %v120 = vld [vmem:[#allocation5 + $0x128] sm:$0xff]
    %v121 = vld [vmem:[#allocation5 + $0x130] sm:$0xff]
    %v122 = vld [vmem:[#allocation5 + $0x138] sm:$0xff]
    %v123 = vld [vmem:[#allocation5 + $0x140] sm:$0xff]
    %v124 = vld [vmem:[#allocation5 + $0x148] sm:$0xff]
    %v125 = vld [vmem:[#allocation5 + $0x150] sm:$0xff]
    %v126 = vld [vmem:[#allocation5 + $0x158] sm:$0xff]
    %v127 = vld [vmem:[#allocation5 + $0x160] sm:$0xff]
    %v128 = vld [vmem:[#allocation5 + $0x168] sm:$0xff]
    %v129 = vld [vmem:[#allocation5 + $0x170] sm:$0xff]
    %v130 = vld [vmem:[#allocation5 + $0x178] sm:$0xff]
    %v131 = vld [vmem:[#allocation5 + $0x180] sm:$0xff]
    %v132 = vld [vmem:[#allocation5 + $0x188] sm:$0xff]
    %v133 = vld [vmem:[#allocation5 + $0x190] sm:$0xff]
    %v134 = vld [vmem:[#allocation5 + $0x198] sm:$0xff]
    %v135 = vld [vmem:[#allocation5 + $0x1a0] sm:$0xff]
    %v136 = vld [vmem:[#allocation5 + $0x1a8] sm:$0xff]
    %v137 = vld [vmem:[#allocation5 + $0x1b0] sm:$0xff]
    %v138 = vld [vmem:[#allocation5 + $0x1b8] sm:$0xff]
    %v139 = vld [vmem:[#allocation5 + $0x1c0] sm:$0xff]
    %v140 = vld [vmem:[#allocation5 + $0x1c8] sm:$0xff]
    %v141 = vld [vmem:[#allocation5 + $0x1d0] sm:$0xff]
    %v142 = vld [vmem:[#allocation5 + $0x1d8] sm:$0xff]
    %v143 = vld [vmem:[#allocation5 + $0x1e0] sm:$0xff]
    %v144 = vld [vmem:[#allocation5 + $0x1e8] sm:$0xff]
    %v145 = vld [vmem:[#allocation5 + $0x1f0] sm:$0xff]
    %v146 = vld [vmem:[#allocation5 + $0x1f8] sm:$0xff]
    %v147 = vld [vmem:[#allocation5 + $0x200] sm:$0xff]
    %v148 = vld [vmem:[#allocation5 + $0x208] sm:$0xff]
    %v149 = vld [vmem:[#allocation5 + $0x210] sm:$0xff]
    %v150 = vld [vmem:[#allocation5 + $0x218] sm:$0xff]
    %v151 = vld [vmem:[#allocation5 + $0x220] sm:$0xff]
    %v152 = vld [vmem:[#allocation5 + $0x228] sm:$0xff]
    %v153 = vld [vmem:[#allocation5 + $0x230] sm:$0xff]
    %v154 = vld [vmem:[#allocation5 + $0x238] sm:$0xff]
    %v155 = vld [vmem:[#allocation5 + $0x240] sm:$0xff]
    %v156 = vld [vmem:[#allocation5 + $0x248] sm:$0xff]
    %v157 = vld [vmem:[#allocation5 + $0x250] sm:$0xff]
    %v158 = vld [vmem:[#allocation5 + $0x258] sm:$0xff]
    %v159 = vld [vmem:[#allocation5 + $0x260] sm:$0xff]
    %v160 = vld [vmem:[#allocation5 + $0x268] sm:$0xff]
    %v161 = vld [vmem:[#allocation5 + $0x270] sm:$0xff]
    %v162 = vld [vmem:[#allocation5 + $0x278] sm:$0xff]
    %v163 = vld [vmem:[#allocation5 + $0x280] sm:$0xff]
    %v164 = vld [vmem:[#allocation5 + $0x288] sm:$0xff]
    %v165 = vld [vmem:[#allocation5 + $0x290] sm:$0xff]
    %v166 = vld [vmem:[#allocation5 + $0x298] sm:$0xff]
    %v167 = vld [vmem:[#allocation5 + $0x2a0] sm:$0xff]
    %v168 = vld [vmem:[#allocation5 + $0x2a8] sm:$0xff]
    %v169 = vld [vmem:[#allocation5 + $0x2b0] sm:$0xff]
    %v170 = vld [vmem:[#allocation5 + $0x2b8] sm:$0xff]
    %v171 = vld [vmem:[#allocation5 + $0x2c0] sm:$0xff]
    %v172 = vld [vmem:[#allocation5 + $0x2c8] sm:$0xff]
    %v173 = vld [vmem:[#allocation5 + $0x2d0] sm:$0xff]
    %v174 = vld [vmem:[#allocation5 + $0x2d8] sm:$0xff]
    %v175 = vld [vmem:[#allocation5 + $0x2e0] sm:$0xff]
    %v176 = vld [vmem:[#allocation5 + $0x2e8] sm:$0xff]
    %v177 = vld [vmem:[#allocation5 + $0x2f0] sm:$0xff]
    %v178 = vld [vmem:[#allocation5 + $0x2f8] sm:$0xff]
    %v179 = vld [vmem:[#allocation5 + $0x300] sm:$0xff]
    %v180 = vld [vmem:[#allocation5 + $0x308] sm:$0xff]
    %v181 = vld [vmem:[#allocation5 + $0x310] sm:$0xff]
    %v182 = vld [vmem:[#allocation5 + $0x318] sm:$0xff]
    %v183 = vld [vmem:[#allocation5 + $0x320] sm:$0xff]
    %v184 = vld [vmem:[#allocation5 + $0x328] sm:$0xff]
    %v185 = vld [vmem:[#allocation5 + $0x330] sm:$0xff]
    %v186 = vld [vmem:[#allocation5 + $0x338] sm:$0xff]
    %v187 = vld [vmem:[#allocation5 + $0x340] sm:$0xff]
    %v188 = vld [vmem:[#allocation5 + $0x348] sm:$0xff]
    %v189 = vld [vmem:[#allocation5 + $0x350] sm:$0xff]
    %v190 = vld [vmem:[#allocation5 + $0x358] sm:$0xff]
    %v191 = vld [vmem:[#allocation5 + $0x360] sm:$0xff]
    %v192 = vld [vmem:[#allocation5 + $0x368] sm:$0xff]
    %v193 = vld [vmem:[#allocation5 + $0x370] sm:$0xff]
    %v194 = vld [vmem:[#allocation5 + $0x378] sm:$0xff]
    %v195 = vld [vmem:[#allocation5 + $0x380] sm:$0xff]
    %v196 = vld [vmem:[#allocation5 + $0x388] sm:$0xff]
    %v197 = vld [vmem:[#allocation5 + $0x390] sm:$0xff]
    %v198 = vld [vmem:[#allocation5 + $0x398] sm:$0xff]
    %v199 = vld [vmem:[#allocation5 + $0x3a0] sm:$0xff]
    %v200 = vld [vmem:[#allocation5 + $0x3a8] sm:$0xff]
    %v201 = vld [vmem:[#allocation5 + $0x3b0] sm:$0xff]
    %v202 = vld [vmem:[#allocation5 + $0x3b8] sm:$0xff]
    %v203 = vld [vmem:[#allocation5 + $0x3c0] sm:$0xff]
    %v204 = vld [vmem:[#allocation5 + $0x3c8] sm:$0xff]
    %v205 = vld [vmem:[#allocation5 + $0x3d0] sm:$0xff]
    %v206 = vld [vmem:[#allocation5 + $0x3d8] sm:$0xff]
    %v207 = vld [vmem:[#allocation5 + $0x3e0] sm:$0xff]
    %v208 = vld [vmem:[#allocation5 + $0x3e8] sm:$0xff]
    %v209 = vld [vmem:[#allocation5 + $0x3f0] sm:$0xff]
    %v210 = vld [vmem:[#allocation5 + $0x3f8] sm:$0xff]
    %v211 = vld [vmem:[#allocation5 + $0x400] sm:$0xff]
    %v212 = vld [vmem:[#allocation5 + $0x408] sm:$0xff]
    %v213 = vld [vmem:[#allocation5 + $0x410] sm:$0xff]
    %v214 = vld [vmem:[#allocation5 + $0x418] sm:$0xff]
    %v215 = vld [vmem:[#allocation5 + $0x420] sm:$0xff]
    %v216 = vld [vmem:[#allocation5 + $0x428] sm:$0xff]
    %v217 = vld [vmem:[#allocation5 + $0x430] sm:$0xff]
    %v218 = vld [vmem:[#allocation5 + $0x438] sm:$0xff]
    %v219 = vld [vmem:[#allocation5 + $0x440] sm:$0xff]
    %v220 = vld [vmem:[#allocation5 + $0x448] sm:$0xff]
    %v221 = vld [vmem:[#allocation5 + $0x450] sm:$0xff]
    %v222 = vld [vmem:[#allocation5 + $0x458] sm:$0xff]
    %v223 = vld [vmem:[#allocation5 + $0x460] sm:$0xff]
    %v224 = vld [vmem:[#allocation5 + $0x468] sm:$0xff]
    %v225 = vld [vmem:[#allocation5 + $0x470] sm:$0xff]
    %v226 = vld [vmem:[#allocation5 + $0x478] sm:$0xff]
    %v227 = vld [vmem:[#allocation5 + $0x480] sm:$0xff]
    %v228 = vld [vmem:[#allocation5 + $0x488] sm:$0xff]
    %v229 = vld [vmem:[#allocation5 + $0x490] sm:$0xff]
    %v230 = vld [vmem:[#allocation5 + $0x498] sm:$0xff]
    %v231 = vld [vmem:[#allocation5 + $0x4a0] sm:$0xff]
    %v232 = vld [vmem:[#allocation5 + $0x4a8] sm:$0xff]
    %v233 = vld [vmem:[#allocation5 + $0x4b0] sm:$0xff]
    %v234 = vld [vmem:[#allocation5 + $0x4b8] sm:$0xff]
    %v235 = vld [vmem:[#allocation5 + $0x4c0] sm:$0xff]
    %v236 = vld [vmem:[#allocation5 + $0x4c8] sm:$0xff]
    %v237 = vld [vmem:[#allocation5 + $0x4d0] sm:$0xff]
    %v238 = vld [vmem:[#allocation5 + $0x4d8] sm:$0xff]
    %v239 = vld [vmem:[#allocation5 + $0x4e0] sm:$0xff]
    %v240 = vld [vmem:[#allocation5 + $0x4e8] sm:$0xff]
    %v241 = vld [vmem:[#allocation5 + $0x4f0] sm:$0xff]
    %v242 = vld [vmem:[#allocation5 + $0x4f8] sm:$0xff]
    %v243 = vld [vmem:[#allocation5 + $0x500] sm:$0xff]
    %v244 = vld [vmem:[#allocation5 + $0x508] sm:$0xff]
    %v245 = vld [vmem:[#allocation5 + $0x510] sm:$0xff]
    %v246 = vld [vmem:[#allocation5 + $0x518] sm:$0xff]
    %v247 = vld [vmem:[#allocation5 + $0x520] sm:$0xff]
    %v248 = vld [vmem:[#allocation5 + $0x528] sm:$0xff]
    %v249 = vld [vmem:[#allocation5 + $0x530] sm:$0xff]
    %v250 = vld [vmem:[#allocation5 + $0x538] sm:$0xff]
    %v251 = vld [vmem:[#allocation5 + $0x540] sm:$0xff]
    %v252 = vld [vmem:[#allocation5 + $0x548] sm:$0xff]
    %v253 = vld [vmem:[#allocation5 + $0x550] sm:$0xff]
    %v254 = vld [vmem:[#allocation5 + $0x558] sm:$0xff]
    %v255 = vld [vmem:[#allocation5 + $0x560] sm:$0xff]
    %v256 = vld [vmem:[#allocation5 + $0x568] sm:$0xff]
    %v257 = vld [vmem:[#allocation5 + $0x570] sm:$0xff]
    %v258 = vld [vmem:[#allocation5 + $0x578] sm:$0xff]
    %v259 = vld [vmem:[#allocation5 + $0x580] sm:$0xff]
    %v260 = vld [vmem:[#allocation5 + $0x588] sm:$0xff]
    %v261 = vld [vmem:[#allocation5 + $0x590] sm:$0xff]
    %v262 = vld [vmem:[#allocation5 + $0x598] sm:$0xff]
    %v263 = vld [vmem:[#allocation5 + $0x5a0] sm:$0xff]
    %v264 = vld [vmem:[#allocation5 + $0x5a8] sm:$0xff]
    %v265 = vld [vmem:[#allocation5 + $0x5b0] sm:$0xff]
    %v266 = vld [vmem:[#allocation5 + $0x5b8] sm:$0xff]
    %v267 = vld [vmem:[#allocation5 + $0x5c0] sm:$0xff]
    %v268 = vld [vmem:[#allocation5 + $0x5c8] sm:$0xff]
    %v269 = vld [vmem:[#allocation5 + $0x5d0] sm:$0xff]
    %v270 = vld [vmem:[#allocation5 + $0x5d8] sm:$0xff]
    %v271 = vld [vmem:[#allocation5 + $0x5e0] sm:$0xff]
    %v272 = vld [vmem:[#allocation5 + $0x5e8] sm:$0xff]
    %v273 = vld [vmem:[#allocation5 + $0x5f0] sm:$0xff]
    %v274 = vld [vmem:[#allocation5 + $0x5f8] sm:$0xff]
    %v275 = vld [vmem:[#allocation5 + $0x600] sm:$0xff]
    %v276 = vld [vmem:[#allocation5 + $0x608] sm:$0xff]
    %v277 = vld [vmem:[#allocation5 + $0x610] sm:$0xff]
    %v278 = vld [vmem:[#allocation5 + $0x618] sm:$0xff]
    %v279 = vld [vmem:[#allocation5 + $0x620] sm:$0xff]
    %v280 = vld [vmem:[#allocation5 + $0x628] sm:$0xff]
    %v281 = vld [vmem:[#allocation5 + $0x630] sm:$0xff]
    %v282 = vld [vmem:[#allocation5 + $0x638] sm:$0xff]
    %v283 = vld [vmem:[#allocation5 + $0x640] sm:$0xff]
    %v284 = vld [vmem:[#allocation5 + $0x648] sm:$0xff]
    %v285 = vld [vmem:[#allocation5 + $0x650] sm:$0xff]
    %v286 = vld [vmem:[#allocation5 + $0x658] sm:$0xff]
    %v287 = vld [vmem:[#allocation5 + $0x660] sm:$0xff]
    %v288 = vld [vmem:[#allocation5 + $0x668] sm:$0xff]
    %v289 = vld [vmem:[#allocation5 + $0x670] sm:$0xff]
    %v290 = vld [vmem:[#allocation5 + $0x678] sm:$0xff]
    %v291 = vld [vmem:[#allocation5 + $0x680] sm:$0xff]
    %v292 = vld [vmem:[#allocation5 + $0x688] sm:$0xff]
    %v293 = vld [vmem:[#allocation5 + $0x690] sm:$0xff]
    %v294 = vld [vmem:[#allocation5 + $0x698] sm:$0xff]
    %v295 = vld [vmem:[#allocation5 + $0x6a0] sm:$0xff]
    %v296 = vld [vmem:[#allocation5 + $0x6a8] sm:$0xff]
    %v297 = vld [vmem:[#allocation5 + $0x6b0] sm:$0xff]
    %v298 = vld [vmem:[#allocation5 + $0x6b8] sm:$0xff]
    %v299 = vld [vmem:[#allocation5 + $0x6c0] sm:$0xff]
    %v300 = vld [vmem:[#allocation5 + $0x6c8] sm:$0xff]
    %v301 = vld [vmem:[#allocation5 + $0x6d0] sm:$0xff]
    %v302 = vld [vmem:[#allocation5 + $0x6d8] sm:$0xff]
    %v303 = vld [vmem:[#allocation5 + $0x6e0] sm:$0xff]
    %v304 = vld [vmem:[#allocation5 + $0x6e8] sm:$0xff]
    %v305 = vld [vmem:[#allocation5 + $0x6f0] sm:$0xff]
    %v306 = vld [vmem:[#allocation5 + $0x6f8] sm:$0xff]
    %v307 = vld [vmem:[#allocation5 + $0x700] sm:$0xff]
    %v308 = vld [vmem:[#allocation5 + $0x708] sm:$0xff]
    %v309 = vld [vmem:[#allocation5 + $0x710] sm:$0xff]
    %v310 = vld [vmem:[#allocation5 + $0x718] sm:$0xff]
    %v311 = vld [vmem:[#allocation5 + $0x720] sm:$0xff]
    %v312 = vld [vmem:[#allocation5 + $0x728] sm:$0xff]
    %v313 = vld [vmem:[#allocation5 + $0x730] sm:$0xff]
    %v314 = vld [vmem:[#allocation5 + $0x738] sm:$0xff]
    %v315 = vld [vmem:[#allocation5 + $0x740] sm:$0xff]
    %v316 = vld [vmem:[#allocation5 + $0x748] sm:$0xff]
    %v317 = vld [vmem:[#allocation5 + $0x750] sm:$0xff]
    %v318 = vld [vmem:[#allocation5 + $0x758] sm:$0xff]
    %v319 = vld [vmem:[#allocation5 + $0x760] sm:$0xff]
    %v320 = vld [vmem:[#allocation5 + $0x768] sm:$0xff]
    %v321 = vld [vmem:[#allocation5 + $0x770] sm:$0xff]
    %v322 = vld [vmem:[#allocation5 + $0x778] sm:$0xff]
    %v323 = vld [vmem:[#allocation5 + $0x780] sm:$0xff]
    %v324 = vld [vmem:[#allocation5 + $0x788] sm:$0xff]
    %v325 = vld [vmem:[#allocation5 + $0x790] sm:$0xff]
    %v326 = vld [vmem:[#allocation5 + $0x798] sm:$0xff]
    %v327 = vld [vmem:[#allocation5 + $0x7a0] sm:$0xff]
    %v328 = vld [vmem:[#allocation5 + $0x7a8] sm:$0xff]
    %v329 = vld [vmem:[#allocation5 + $0x7b0] sm:$0xff]
    %v330 = vld [vmem:[#allocation5 + $0x7b8] sm:$0xff]
    %v331 = vld [vmem:[#allocation5 + $0x7c0] sm:$0xff]
    %v332 = vld [vmem:[#allocation5 + $0x7c8] sm:$0xff]
    %v333 = vld [vmem:[#allocation5 + $0x7d0] sm:$0xff]
    %v334 = vld [vmem:[#allocation5 + $0x7d8] sm:$0xff]
    %v335 = vld [vmem:[#allocation5 + $0x7e0] sm:$0xff]
    %v336 = vld [vmem:[#allocation5 + $0x7e8] sm:$0xff]
    %v337 = vld [vmem:[#allocation5 + $0x7f0] sm:$0xff]
    %v338 = vld [vmem:[#allocation5 + $0x7f8] sm:$0xff]
    %v339 = vld [vmem:[#allocation5 + $0x800] sm:$0xff]
    %v340 = vld [vmem:[#allocation5 + $0x808] sm:$0xff]
    %v341 = vld [vmem:[#allocation5 + $0x810] sm:$0xff]
    %v342 = vld [vmem:[#allocation5 + $0x818] sm:$0xff]
    %v343 = vld [vmem:[#allocation5 + $0x820] sm:$0xff]
    %v344 = vld [vmem:[#allocation5 + $0x828] sm:$0xff]
    %v345 = vld [vmem:[#allocation5 + $0x830] sm:$0xff]
    %v346 = vld [vmem:[#allocation5 + $0x838] sm:$0xff]
    %v347 = vld [vmem:[#allocation5 + $0x840] sm:$0xff]
    %v348 = vld [vmem:[#allocation5 + $0x848] sm:$0xff]
    %v349 = vld [vmem:[#allocation5 + $0x850] sm:$0xff]
    %v350 = vld [vmem:[#allocation5 + $0x858] sm:$0xff]
    %v351 = vld [vmem:[#allocation5 + $0x860] sm:$0xff]
    %v352 = vld [vmem:[#allocation5 + $0x868] sm:$0xff]
    %v353 = vld [vmem:[#allocation5 + $0x870] sm:$0xff]
    %v354 = vld [vmem:[#allocation5 + $0x878] sm:$0xff]
    %v355 = vld [vmem:[#allocation5 + $0x880] sm:$0xff]
    %v356 = vld [vmem:[#allocation5 + $0x888] sm:$0xff]
    %v357 = vld [vmem:[#allocation5 + $0x890] sm:$0xff]
    %v358 = vld [vmem:[#allocation5 + $0x898] sm:$0xff]
    %v359 = vld [vmem:[#allocation5 + $0x8a0] sm:$0xff]
    %v360 = vld [vmem:[#allocation5 + $0x8a8] sm:$0xff]
    %v361 = vld [vmem:[#allocation5 + $0x8b0] sm:$0xff]
    %v362 = vld [vmem:[#allocation5 + $0x8b8] sm:$0xff]
    %v363 = vld [vmem:[#allocation5 + $0x8c0] sm:$0xff]
    %v364 = vld [vmem:[#allocation5 + $0x8c8] sm:$0xff]
    %v365 = vld [vmem:[#allocation5 + $0x8d0] sm:$0xff]
    %v366 = vld [vmem:[#allocation5 + $0x8d8] sm:$0xff]
    %v367 = vld [vmem:[#allocation5 + $0x8e0] sm:$0xff]
    %v368 = vld [vmem:[#allocation5 + $0x8e8] sm:$0xff]
    %v369 = vld [vmem:[#allocation5 + $0x8f0] sm:$0xff]
    %v370 = vld [vmem:[#allocation5 + $0x8f8] sm:$0xff]
    %v371 = vld [vmem:[#allocation5 + $0x900] sm:$0xff]
    %v372 = vld [vmem:[#allocation5 + $0x908] sm:$0xff]
    %v373 = vld [vmem:[#allocation5 + $0x910] sm:$0xff]
    %v374 = vld [vmem:[#allocation5 + $0x918] sm:$0xff]
    %v375 = vld [vmem:[#allocation5 + $0x920] sm:$0xff]
    %v376 = vld [vmem:[#allocation5 + $0x928] sm:$0xff]
    %v377 = vld [vmem:[#allocation5 + $0x930] sm:$0xff]
    %v378 = vld [vmem:[#allocation5 + $0x938] sm:$0xff]
    %v379 = vld [vmem:[#allocation5 + $0x940] sm:$0xff]
    %v380 = vld [vmem:[#allocation5 + $0x948] sm:$0xff]
    %v381 = vld [vmem:[#allocation5 + $0x950] sm:$0xff]
    %v382 = vld [vmem:[#allocation5 + $0x958] sm:$0xff]
    %v383 = vld [vmem:[#allocation5 + $0x960] sm:$0xff]
    %v384 = vld [vmem:[#allocation5 + $0x968] sm:$0xff]
    %v385 = vld [vmem:[#allocation5 + $0x970] sm:$0xff]
    %v386 = vld [vmem:[#allocation5 + $0x978] sm:$0xff]
    %v387 = vld [vmem:[#allocation5 + $0x980] sm:$0xff]
    %v388 = vld [vmem:[#allocation5 + $0x988] sm:$0xff]
    %v389 = vld [vmem:[#allocation5 + $0x990] sm:$0xff]
    %v390 = vld [vmem:[#allocation5 + $0x998] sm:$0xff]
    %v391 = vld [vmem:[#allocation5 + $0x9a0] sm:$0xff]
    %v392 = vld [vmem:[#allocation5 + $0x9a8] sm:$0xff]
    %v393 = vld [vmem:[#allocation5 + $0x9b0] sm:$0xff]
    %v394 = vld [vmem:[#allocation5 + $0x9b8] sm:$0xff]
    %v395 = vld [vmem:[#allocation5 + $0x9c0] sm:$0xff]
    %v396 = vld [vmem:[#allocation5 + $0x9c8] sm:$0xff]
    %v397 = vld [vmem:[#allocation5 + $0x9d0] sm:$0xff]
    %v398 = vld [vmem:[#allocation5 + $0x9d8] sm:$0xff]
    %v399 = vld [vmem:[#allocation5 + $0x9e0] sm:$0xff]
    %v400 = vld [vmem:[#allocation5 + $0x9e8] sm:$0xff]
    %v401 = vld [vmem:[#allocation5 + $0x9f0] sm:$0xff]
    %v402 = vld [vmem:[#allocation5 + $0x9f8] sm:$0xff]
    %v403 = vld [vmem:[#allocation5 + $0xa00] sm:$0xff]
    %v404 = vld [vmem:[#allocation5 + $0xa08] sm:$0xff]
    %v405 = vld [vmem:[#allocation5 + $0xa10] sm:$0xff]
    %v406 = vld [vmem:[#allocation5 + $0xa18] sm:$0xff]
    %v407 = vld [vmem:[#allocation5 + $0xa20] sm:$0xff]
    %v408 = vld [vmem:[#allocation5 + $0xa28] sm:$0xff]
    %v409 = vld [vmem:[#allocation5 + $0xa30] sm:$0xff]
    %v410 = vld [vmem:[#allocation5 + $0xa38] sm:$0xff]
    %v411 = vld [vmem:[#allocation5 + $0xa40] sm:$0xff]
    %v412 = vld [vmem:[#allocation5 + $0xa48] sm:$0xff]
    %v413 = vld [vmem:[#allocation5 + $0xa50] sm:$0xff]
    %v414 = vld [vmem:[#allocation5 + $0xa58] sm:$0xff]
    %v415 = vld [vmem:[#allocation5 + $0xa60] sm:$0xff]
    %v416 = vld [vmem:[#allocation5 + $0xa68] sm:$0xff]
    %v417 = vld [vmem:[#allocation5 + $0xa70] sm:$0xff]
    %v418 = vld [vmem:[#allocation5 + $0xa78] sm:$0xff]
    %v419 = vld [vmem:[#allocation5 + $0xa80] sm:$0xff]
    %v420 = vld [vmem:[#allocation5 + $0xa88] sm:$0xff]
    %v421 = vld [vmem:[#allocation5 + $0xa90] sm:$0xff]
    %v422 = vld [vmem:[#allocation5 + $0xa98] sm:$0xff]
    %v423 = vld [vmem:[#allocation5 + $0xaa0] sm:$0xff]
    %v424 = vld [vmem:[#allocation5 + $0xaa8] sm:$0xff]
    %v425 = vld [vmem:[#allocation5 + $0xab0] sm:$0xff]
    %v426 = vld [vmem:[#allocation5 + $0xab8] sm:$0xff]
    %v427 = vld [vmem:[#allocation5 + $0xac0] sm:$0xff]
    %v428 = vld [vmem:[#allocation5 + $0xac8] sm:$0xff]
    %v429 = vld [vmem:[#allocation5 + $0xad0] sm:$0xff]
    %v430 = vld [vmem:[#allocation5 + $0xad8] sm:$0xff]
    %v431 = vld [vmem:[#allocation5 + $0xae0] sm:$0xff]
    %v432 = vld [vmem:[#allocation5 + $0xae8] sm:$0xff]
    %v433 = vld [vmem:[#allocation5 + $0xaf0] sm:$0xff]
    %v434 = vld [vmem:[#allocation5 + $0xaf8] sm:$0xff]
    %v435 = vld [vmem:[#allocation5 + $0xb00] sm:$0xff]
    %v436 = vld [vmem:[#allocation5 + $0xb08] sm:$0xff]
    %v437 = vld [vmem:[#allocation5 + $0xb10] sm:$0xff]
    %v438 = vld [vmem:[#allocation5 + $0xb18] sm:$0xff]
    %v439 = vld [vmem:[#allocation5 + $0xb20] sm:$0xff]
    %v440 = vld [vmem:[#allocation5 + $0xb28] sm:$0xff]
    %v441 = vld [vmem:[#allocation5 + $0xb30] sm:$0xff]
    %v442 = vld [vmem:[#allocation5 + $0xb38] sm:$0xff]
    %v443 = vld [vmem:[#allocation5 + $0xb40] sm:$0xff]
    %v444 = vld [vmem:[#allocation5 + $0xb48] sm:$0xff]
    %v445 = vld [vmem:[#allocation5 + $0xb50] sm:$0xff]
    %v446 = vld [vmem:[#allocation5 + $0xb58] sm:$0xff]
    %v447 = vld [vmem:[#allocation5 + $0xb60] sm:$0xff]
    %v448 = vld [vmem:[#allocation5 + $0xb68] sm:$0xff]
    %v449 = vld [vmem:[#allocation5 + $0xb70] sm:$0xff]
    %v450 = vld [vmem:[#allocation5 + $0xb78] sm:$0xff]
    %v451 = vld [vmem:[#allocation5 + $0xb80] sm:$0xff]
    %v452 = vld [vmem:[#allocation5 + $0xb88] sm:$0xff]
    %v453 = vld [vmem:[#allocation5 + $0xb90] sm:$0xff]
    %v454 = vld [vmem:[#allocation5 + $0xb98] sm:$0xff]
    %v455 = vld [vmem:[#allocation5 + $0xba0] sm:$0xff]
    %v456 = vld [vmem:[#allocation5 + $0xba8] sm:$0xff]
    %v457 = vld [vmem:[#allocation5 + $0xbb0] sm:$0xff]
    %v458 = vld [vmem:[#allocation5 + $0xbb8] sm:$0xff]
    %v459 = vld [vmem:[#allocation5 + $0xbc0] sm:$0xff]
    %v460 = vld [vmem:[#allocation5 + $0xbc8] sm:$0xff]
    %v461 = vld [vmem:[#allocation5 + $0xbd0] sm:$0xff]
    %v462 = vld [vmem:[#allocation5 + $0xbd8] sm:$0xff]
    %v463 = vld [vmem:[#allocation5 + $0xbe0] sm:$0xff]
    %v464 = vld [vmem:[#allocation5 + $0xbe8] sm:$0xff]
    %v465 = vld [vmem:[#allocation5 + $0xbf0] sm:$0xff]
    %v466 = vld [vmem:[#allocation5 + $0xbf8] sm:$0xff]
    %473 = vst [vmem:[#allocation1] ss:$4 sm:$0xff] %v77
    %s474 = scalar_lea.vmem [#allocation1], 32
    %475 = vst [vmem:[%s474] ss:$4 sm:$0xff] %v78
    %v476 = vld.sshfl [vmem:[#allocation1] sm:$0xff pattern:$0x73625140]
    %v477 = vld.sshfl [vmem:[#allocation1 + $0x8] sm:$0xff pattern:$0x73625140]
    %v478 = vld.sshfl [vmem:[#allocation1 + $0x10] sm:$0xff pattern:$0x73625140]
    %v479 = vld.sshfl [vmem:[#allocation1 + $0x18] sm:$0xff pattern:$0x73625140]
    %v480 = vld.sshfl [vmem:[#allocation1 + $0x20] sm:$0xff pattern:$0x73625140]
    %v481 = vld.sshfl [vmem:[#allocation1 + $0x28] sm:$0xff pattern:$0x73625140]
    %v482 = vld.sshfl [vmem:[#allocation1 + $0x30] sm:$0xff pattern:$0x73625140]
    %v483 = vld.sshfl [vmem:[#allocation1 + $0x38] sm:$0xff pattern:$0x73625140]
    %484 = vst [vmem:[#allocation1] ss:$4 sm:$0xff] %v79
    %485 = vst [vmem:[%s474] ss:$4 sm:$0xff] %v80
    %v486 = vld.sshfl [vmem:[#allocation1] sm:$0xff pattern:$0x73625140]
    %v487 = vld.sshfl [vmem:[#allocation1 + $0x8] sm:$0xff pattern:$0x73625140]
    %v488 = vld.sshfl [vmem:[#allocation1 + $0x10] sm:$0xff pattern:$0x73625140]
    %v489 = vld.sshfl [vmem:[#allocation1 + $0x18] sm:$0xff pattern:$0x73625140]
    %v490 = vld.sshfl [vmem:[#allocation1 + $0x20] sm:$0xff pattern:$0x73625140]
    %v491 = vld.sshfl [vmem:[#allocation1 + $0x28] sm:$0xff pattern:$0x73625140]
    %v492 = vld.sshfl [vmem:[#allocation1 + $0x30] sm:$0xff pattern:$0x73625140]
    %v493 = vld.sshfl [vmem:[#allocation1 + $0x38] sm:$0xff pattern:$0x73625140]
    %494 = vst [vmem:[#allocation1] ss:$4 sm:$0xff] %v81
    %495 = vst [vmem:[%s474] ss:$4 sm:$0xff] %v82
    %v496 = vld.sshfl [vmem:[#allocation1] sm:$0xff pattern:$0x73625140]
    %v497 = vld.sshfl [vmem:[#allocation1 + $0x8] sm:$0xff pattern:$0x73625140]
    %v498 = vld.sshfl [vmem:[#allocation1 + $0x10] sm:$0xff pattern:$0x73625140]
    %v499 = vld.sshfl [vmem:[#allocation1 + $0x18] sm:$0xff pattern:$0x73625140]
    %v500 = vld.sshfl [vmem:[#allocation1 + $0x20] sm:$0xff pattern:$0x73625140]
    %v501 = vld.sshfl [vmem:[#allocation1 + $0x28] sm:$0xff pattern:$0x73625140]
    %v502 = vld.sshfl [vmem:[#allocation1 + $0x30] sm:$0xff pattern:$0x73625140]
    %v503 = vld.sshfl [vmem:[#allocation1 + $0x38] sm:$0xff pattern:$0x73625140]
    %528 = vmatpush.msra.mxu0 %v98
    %529 = vmatpush.msra.mxu0 %v97
    %530 = vmatpush.msra.mxu0 %v96
    %531 = vmatpush.msra.mxu0 %v95
    %532 = vmatpush.msra.mxu0 %v94
    %533 = vmatpush.msra.mxu0 %v93
    %534 = vmatpush.msra.mxu0 %v92
    %535 = vmatpush.msra.mxu0 %v91
    %536 = vmatpush.msra.mxu0 %v90
    %537 = vmatpush.msra.mxu0 %v89
    %538 = vmatpush.msra.mxu0 %v88
    %539 = vmatpush.msra.mxu0 %v87
    %540 = vmatpush.msra.mxu0 %v86
    %541 = vmatpush.msra.mxu0 %v85
    %542 = vmatpush.msra.mxu0 %v84
    %543 = vmatpush.msra.mxu0 %v83
    %544 = vmatmul.f32.gmra.mxu0 %v476
    %v545 = vpop.f32.mrf.mxu0
    %v546 = vadd.f32 0.0, %v545
    %547 = vdwg.mxu0
    %548 = vmatpush.msra.mxu0 %v114
    %549 = vmatpush.msra.mxu0 %v113
    %550 = vmatpush.msra.mxu0 %v112
    %551 = vmatpush.msra.mxu0 %v111
    %552 = vmatpush.msra.mxu0 %v110
    %553 = vmatpush.msra.mxu0 %v109
    %554 = vmatpush.msra.mxu0 %v108
    %555 = vmatpush.msra.mxu0 %v107
    %556 = vmatpush.msra.mxu0 %v106
    %557 = vmatpush.msra.mxu0 %v105
    %558 = vmatpush.msra.mxu0 %v104
    %559 = vmatpush.msra.mxu0 %v103
    %560 = vmatpush.msra.mxu0 %v102
    %561 = vmatpush.msra.mxu0 %v101
    %562 = vmatpush.msra.mxu0 %v100
    %563 = vmatpush.msra.mxu0 %v99
    %564 = vmatmul.f32.gmra.mxu0 %v477
    %v565 = vpop.f32.mrf.mxu0
    %v566 = vadd.f32 %v546, %v565
    %567 = vdwg.mxu0
    %568 = vmatpush.msra.mxu0 %v130
    %569 = vmatpush.msra.mxu0 %v129
    %570 = vmatpush.msra.mxu0 %v128
    %571 = vmatpush.msra.mxu0 %v127
    %572 = vmatpush.msra.mxu0 %v126
    %573 = vmatpush.msra.mxu0 %v125
    %574 = vmatpush.msra.mxu0 %v124
    %575 = vmatpush.msra.mxu0 %v123
    %576 = vmatpush.msra.mxu0 %v122
    %577 = vmatpush.msra.mxu0 %v121
    %578 = vmatpush.msra.mxu0 %v120
    %579 = vmatpush.msra.mxu0 %v119
    %580 = vmatpush.msra.mxu0 %v118
    %581 = vmatpush.msra.mxu0 %v117
    %582 = vmatpush.msra.mxu0 %v116
    %583 = vmatpush.msra.mxu0 %v115
    %584 = vmatmul.f32.gmra.mxu0 %v478
    %v585 = vpop.f32.mrf.mxu0
    %v586 = vadd.f32 %v566, %v585
    %587 = vdwg.mxu0
    %588 = vmatpush.msra.mxu0 %v146
    %589 = vmatpush.msra.mxu0 %v145
    %590 = vmatpush.msra.mxu0 %v144
    %591 = vmatpush.msra.mxu0 %v143
    %592 = vmatpush.msra.mxu0 %v142
    %593 = vmatpush.msra.mxu0 %v141
    %594 = vmatpush.msra.mxu0 %v140
    %595 = vmatpush.msra.mxu0 %v139
    %596 = vmatpush.msra.mxu0 %v138
    %597 = vmatpush.msra.mxu0 %v137
    %598 = vmatpush.msra.mxu0 %v136
    %599 = vmatpush.msra.mxu0 %v135
    %600 = vmatpush.msra.mxu0 %v134
    %601 = vmatpush.msra.mxu0 %v133
    %602 = vmatpush.msra.mxu0 %v132
    %603 = vmatpush.msra.mxu0 %v131
    %604 = vmatmul.f32.gmra.mxu0 %v479
    %v605 = vpop.f32.mrf.mxu0
    %v606 = vadd.f32 %v586, %v605
    %607 = vdwg.mxu0
    %608 = vmatpush.msra.mxu0 %v162
    %609 = vmatpush.msra.mxu0 %v161
    %610 = vmatpush.msra.mxu0 %v160
    %611 = vmatpush.msra.mxu0 %v159
    %612 = vmatpush.msra.mxu0 %v158
    %613 = vmatpush.msra.mxu0 %v157
    %614 = vmatpush.msra.mxu0 %v156
    %615 = vmatpush.msra.mxu0 %v155
    %616 = vmatpush.msra.mxu0 %v154
    %617 = vmatpush.msra.mxu0 %v153
    %618 = vmatpush.msra.mxu0 %v152
    %619 = vmatpush.msra.mxu0 %v151
    %620 = vmatpush.msra.mxu0 %v150
    %621 = vmatpush.msra.mxu0 %v149
    %622 = vmatpush.msra.mxu0 %v148
    %623 = vmatpush.msra.mxu0 %v147
    %624 = vmatmul.f32.gmra.mxu0 %v480
    %v625 = vpop.f32.mrf.mxu0
    %v626 = vadd.f32 %v606, %v625
    %627 = vdwg.mxu0
    %628 = vmatpush.msra.mxu0 %v178
    %629 = vmatpush.msra.mxu0 %v177
    %630 = vmatpush.msra.mxu0 %v176
    %631 = vmatpush.msra.mxu0 %v175
    %632 = vmatpush.msra.mxu0 %v174
    %633 = vmatpush.msra.mxu0 %v173
    %634 = vmatpush.msra.mxu0 %v172
    %635 = vmatpush.msra.mxu0 %v171
    %636 = vmatpush.msra.mxu0 %v170
    %637 = vmatpush.msra.mxu0 %v169
    %638 = vmatpush.msra.mxu0 %v168
    %639 = vmatpush.msra.mxu0 %v167
    %640 = vmatpush.msra.mxu0 %v166
    %641 = vmatpush.msra.mxu0 %v165
    %642 = vmatpush.msra.mxu0 %v164
    %643 = vmatpush.msra.mxu0 %v163
    %644 = vmatmul.f32.gmra.mxu0 %v481
    %v645 = vpop.f32.mrf.mxu0
    %v646 = vadd.f32 %v626, %v645
    %647 = vdwg.mxu0
    %648 = vmatpush.msra.mxu0 %v194
    %649 = vmatpush.msra.mxu0 %v193
    %650 = vmatpush.msra.mxu0 %v192
    %651 = vmatpush.msra.mxu0 %v191
    %652 = vmatpush.msra.mxu0 %v190
    %653 = vmatpush.msra.mxu0 %v189
    %654 = vmatpush.msra.mxu0 %v188
    %655 = vmatpush.msra.mxu0 %v187
    %656 = vmatpush.msra.mxu0 %v186
    %657 = vmatpush.msra.mxu0 %v185
    %658 = vmatpush.msra.mxu0 %v184
    %659 = vmatpush.msra.mxu0 %v183
    %660 = vmatpush.msra.mxu0 %v182
    %661 = vmatpush.msra.mxu0 %v181
    %662 = vmatpush.msra.mxu0 %v180
    %663 = vmatpush.msra.mxu0 %v179
    %664 = vmatmul.f32.gmra.mxu0 %v482
    %v665 = vpop.f32.mrf.mxu0
    %v666 = vadd.f32 %v646, %v665
    %667 = vdwg.mxu0
    %668 = vmatpush.msra.mxu0 %v210
    %669 = vmatpush.msra.mxu0 %v209
    %670 = vmatpush.msra.mxu0 %v208
    %671 = vmatpush.msra.mxu0 %v207
    %672 = vmatpush.msra.mxu0 %v206
    %673 = vmatpush.msra.mxu0 %v205
    %674 = vmatpush.msra.mxu0 %v204
    %675 = vmatpush.msra.mxu0 %v203
    %676 = vmatpush.msra.mxu0 %v202
    %677 = vmatpush.msra.mxu0 %v201
    %678 = vmatpush.msra.mxu0 %v200
    %679 = vmatpush.msra.mxu0 %v199
    %680 = vmatpush.msra.mxu0 %v198
    %681 = vmatpush.msra.mxu0 %v197
    %682 = vmatpush.msra.mxu0 %v196
    %683 = vmatpush.msra.mxu0 %v195
    %684 = vmatmul.f32.gmra.mxu0 %v483
    %v685 = vpop.f32.mrf.mxu0
    %v686 = vadd.f32 %v666, %v685
    %687 = vdwg.mxu0
    %688 = vmatpush.msra.mxu0 %v226
    %689 = vmatpush.msra.mxu0 %v225
    %690 = vmatpush.msra.mxu0 %v224
    %691 = vmatpush.msra.mxu0 %v223
    %692 = vmatpush.msra.mxu0 %v222
    %693 = vmatpush.msra.mxu0 %v221
    %694 = vmatpush.msra.mxu0 %v220
    %695 = vmatpush.msra.mxu0 %v219
    %696 = vmatpush.msra.mxu0 %v218
    %697 = vmatpush.msra.mxu0 %v217
    %698 = vmatpush.msra.mxu0 %v216
    %699 = vmatpush.msra.mxu0 %v215
    %700 = vmatpush.msra.mxu0 %v214
    %701 = vmatpush.msra.mxu0 %v213
    %702 = vmatpush.msra.mxu0 %v212
    %703 = vmatpush.msra.mxu0 %v211
    %704 = vmatmul.f32.gmra.mxu0 %v486
    %v705 = vpop.f32.mrf.mxu0
    %v706 = vadd.f32 %v686, %v705
    %707 = vdwg.mxu0
    %708 = vmatpush.msra.mxu0 %v242
    %709 = vmatpush.msra.mxu0 %v241
    %710 = vmatpush.msra.mxu0 %v240
    %711 = vmatpush.msra.mxu0 %v239
    %712 = vmatpush.msra.mxu0 %v238
    %713 = vmatpush.msra.mxu0 %v237
    %714 = vmatpush.msra.mxu0 %v236
    %715 = vmatpush.msra.mxu0 %v235
    %716 = vmatpush.msra.mxu0 %v234
    %717 = vmatpush.msra.mxu0 %v233
    %718 = vmatpush.msra.mxu0 %v232
    %719 = vmatpush.msra.mxu0 %v231
    %720 = vmatpush.msra.mxu0 %v230
    %721 = vmatpush.msra.mxu0 %v229
    %722 = vmatpush.msra.mxu0 %v228
    %723 = vmatpush.msra.mxu0 %v227
    %724 = vmatmul.f32.gmra.mxu0 %v487
    %v725 = vpop.f32.mrf.mxu0
    %v726 = vadd.f32 %v706, %v725
    %727 = vdwg.mxu0
    %728 = vmatpush.msra.mxu0 %v258
    %729 = vmatpush.msra.mxu0 %v257
    %730 = vmatpush.msra.mxu0 %v256
    %731 = vmatpush.msra.mxu0 %v255
    %732 = vmatpush.msra.mxu0 %v254
    %733 = vmatpush.msra.mxu0 %v253
    %734 = vmatpush.msra.mxu0 %v252
    %735 = vmatpush.msra.mxu0 %v251
    %736 = vmatpush.msra.mxu0 %v250
    %737 = vmatpush.msra.mxu0 %v249
    %738 = vmatpush.msra.mxu0 %v248
    %739 = vmatpush.msra.mxu0 %v247
    %740 = vmatpush.msra.mxu0 %v246
    %741 = vmatpush.msra.mxu0 %v245
    %742 = vmatpush.msra.mxu0 %v244
    %743 = vmatpush.msra.mxu0 %v243
    %744 = vmatmul.f32.gmra.mxu0 %v488
    %v745 = vpop.f32.mrf.mxu0
    %v746 = vadd.f32 %v726, %v745
    %747 = vdwg.mxu0
    %748 = vmatpush.msra.mxu0 %v274
    %749 = vmatpush.msra.mxu0 %v273
    %750 = vmatpush.msra.mxu0 %v272
    %751 = vmatpush.msra.mxu0 %v271
    %752 = vmatpush.msra.mxu0 %v270
    %753 = vmatpush.msra.mxu0 %v269
    %754 = vmatpush.msra.mxu0 %v268
    %755 = vmatpush.msra.mxu0 %v267
    %756 = vmatpush.msra.mxu0 %v266
    %757 = vmatpush.msra.mxu0 %v265
    %758 = vmatpush.msra.mxu0 %v264
    %759 = vmatpush.msra.mxu0 %v263
    %760 = vmatpush.msra.mxu0 %v262
    %761 = vmatpush.msra.mxu0 %v261
    %762 = vmatpush.msra.mxu0 %v260
    %763 = vmatpush.msra.mxu0 %v259
    %764 = vmatmul.f32.gmra.mxu0 %v489
    %v765 = vpop.f32.mrf.mxu0
    %v766 = vadd.f32 %v746, %v765
    %767 = vdwg.mxu0
    %768 = vmatpush.msra.mxu0 %v290
    %769 = vmatpush.msra.mxu0 %v289
    %770 = vmatpush.msra.mxu0 %v288
    %771 = vmatpush.msra.mxu0 %v287
    %772 = vmatpush.msra.mxu0 %v286
    %773 = vmatpush.msra.mxu0 %v285
    %774 = vmatpush.msra.mxu0 %v284
    %775 = vmatpush.msra.mxu0 %v283
    %776 = vmatpush.msra.mxu0 %v282
    %777 = vmatpush.msra.mxu0 %v281
    %778 = vmatpush.msra.mxu0 %v280
    %779 = vmatpush.msra.mxu0 %v279
    %780 = vmatpush.msra.mxu0 %v278
    %781 = vmatpush.msra.mxu0 %v277
    %782 = vmatpush.msra.mxu0 %v276
    %783 = vmatpush.msra.mxu0 %v275
    %784 = vmatmul.f32.gmra.mxu0 %v490
    %v785 = vpop.f32.mrf.mxu0
    %v786 = vadd.f32 %v766, %v785
    %787 = vdwg.mxu0
    %788 = vmatpush.msra.mxu0 %v306
    %789 = vmatpush.msra.mxu0 %v305
    %790 = vmatpush.msra.mxu0 %v304
    %791 = vmatpush.msra.mxu0 %v303
    %792 = vmatpush.msra.mxu0 %v302
    %793 = vmatpush.msra.mxu0 %v301
    %794 = vmatpush.msra.mxu0 %v300
    %795 = vmatpush.msra.mxu0 %v299
    %796 = vmatpush.msra.mxu0 %v298
    %797 = vmatpush.msra.mxu0 %v297
    %798 = vmatpush.msra.mxu0 %v296
    %799 = vmatpush.msra.mxu0 %v295
    %800 = vmatpush.msra.mxu0 %v294
    %801 = vmatpush.msra.mxu0 %v293
    %802 = vmatpush.msra.mxu0 %v292
    %803 = vmatpush.msra.mxu0 %v291
    %804 = vmatmul.f32.gmra.mxu0 %v491
    %v805 = vpop.f32.mrf.mxu0
    %v806 = vadd.f32 %v786, %v805
    %807 = vdwg.mxu0
    %808 = vmatpush.msra.mxu0 %v322
    %809 = vmatpush.msra.mxu0 %v321
    %810 = vmatpush.msra.mxu0 %v320
    %811 = vmatpush.msra.mxu0 %v319
    %812 = vmatpush.msra.mxu0 %v318
    %813 = vmatpush.msra.mxu0 %v317
    %814 = vmatpush.msra.mxu0 %v316
    %815 = vmatpush.msra.mxu0 %v315
    %816 = vmatpush.msra.mxu0 %v314
    %817 = vmatpush.msra.mxu0 %v313
    %818 = vmatpush.msra.mxu0 %v312
    %819 = vmatpush.msra.mxu0 %v311
    %820 = vmatpush.msra.mxu0 %v310
    %821 = vmatpush.msra.mxu0 %v309
    %822 = vmatpush.msra.mxu0 %v308
    %823 = vmatpush.msra.mxu0 %v307
    %824 = vmatmul.f32.gmra.mxu0 %v492
    %v825 = vpop.f32.mrf.mxu0
    %v826 = vadd.f32 %v806, %v825
    %827 = vdwg.mxu0
    %828 = vmatpush.msra.mxu0 %v338
    %829 = vmatpush.msra.mxu0 %v337
    %830 = vmatpush.msra.mxu0 %v336
    %831 = vmatpush.msra.mxu0 %v335
    %832 = vmatpush.msra.mxu0 %v334
    %833 = vmatpush.msra.mxu0 %v333
    %834 = vmatpush.msra.mxu0 %v332
    %835 = vmatpush.msra.mxu0 %v331
    %836 = vmatpush.msra.mxu0 %v330
    %837 = vmatpush.msra.mxu0 %v329
    %838 = vmatpush.msra.mxu0 %v328
    %839 = vmatpush.msra.mxu0 %v327
    %840 = vmatpush.msra.mxu0 %v326
    %841 = vmatpush.msra.mxu0 %v325
    %842 = vmatpush.msra.mxu0 %v324
    %843 = vmatpush.msra.mxu0 %v323
    %844 = vmatmul.f32.gmra.mxu0 %v493
    %v845 = vpop.f32.mrf.mxu0
    %v846 = vadd.f32 %v826, %v845
    %847 = vdwg.mxu0
    %848 = vmatpush.msra.mxu0 %v354
    %849 = vmatpush.msra.mxu0 %v353
    %850 = vmatpush.msra.mxu0 %v352
    %851 = vmatpush.msra.mxu0 %v351
    %852 = vmatpush.msra.mxu0 %v350
    %853 = vmatpush.msra.mxu0 %v349
    %854 = vmatpush.msra.mxu0 %v348
    %855 = vmatpush.msra.mxu0 %v347
    %856 = vmatpush.msra.mxu0 %v346
    %857 = vmatpush.msra.mxu0 %v345
    %858 = vmatpush.msra.mxu0 %v344
    %859 = vmatpush.msra.mxu0 %v343
    %860 = vmatpush.msra.mxu0 %v342
    %861 = vmatpush.msra.mxu0 %v341
    %862 = vmatpush.msra.mxu0 %v340
    %863 = vmatpush.msra.mxu0 %v339
    %864 = vmatmul.f32.gmra.mxu0 %v496
    %v865 = vpop.f32.mrf.mxu0
    %v866 = vadd.f32 %v846, %v865
    %867 = vdwg.mxu0
    %868 = vmatpush.msra.mxu0 %v370
    %869 = vmatpush.msra.mxu0 %v369
    %870 = vmatpush.msra.mxu0 %v368
    %871 = vmatpush.msra.mxu0 %v367
    %872 = vmatpush.msra.mxu0 %v366
    %873 = vmatpush.msra.mxu0 %v365
    %874 = vmatpush.msra.mxu0 %v364
    %875 = vmatpush.msra.mxu0 %v363
    %876 = vmatpush.msra.mxu0 %v362
    %877 = vmatpush.msra.mxu0 %v361
    %878 = vmatpush.msra.mxu0 %v360
    %879 = vmatpush.msra.mxu0 %v359
    %880 = vmatpush.msra.mxu0 %v358
    %881 = vmatpush.msra.mxu0 %v357
    %882 = vmatpush.msra.mxu0 %v356
    %883 = vmatpush.msra.mxu0 %v355
    %884 = vmatmul.f32.gmra.mxu0 %v497
    %v885 = vpop.f32.mrf.mxu0
    %v886 = vadd.f32 %v866, %v885
    %887 = vdwg.mxu0
    %888 = vmatpush.msra.mxu0 %v386
    %889 = vmatpush.msra.mxu0 %v385
    %890 = vmatpush.msra.mxu0 %v384
    %891 = vmatpush.msra.mxu0 %v383
    %892 = vmatpush.msra.mxu0 %v382
    %893 = vmatpush.msra.mxu0 %v381
    %894 = vmatpush.msra.mxu0 %v380
    %895 = vmatpush.msra.mxu0 %v379
    %896 = vmatpush.msra.mxu0 %v378
    %897 = vmatpush.msra.mxu0 %v377
    %898 = vmatpush.msra.mxu0 %v376
    %899 = vmatpush.msra.mxu0 %v375
    %900 = vmatpush.msra.mxu0 %v374
    %901 = vmatpush.msra.mxu0 %v373
    %902 = vmatpush.msra.mxu0 %v372
    %903 = vmatpush.msra.mxu0 %v371
    %904 = vmatmul.f32.gmra.mxu0 %v498
    %v905 = vpop.f32.mrf.mxu0
    %v906 = vadd.f32 %v886, %v905
    %907 = vdwg.mxu0
    %908 = vmatpush.msra.mxu0 %v402
    %909 = vmatpush.msra.mxu0 %v401
    %910 = vmatpush.msra.mxu0 %v400
    %911 = vmatpush.msra.mxu0 %v399
    %912 = vmatpush.msra.mxu0 %v398
    %913 = vmatpush.msra.mxu0 %v397
    %914 = vmatpush.msra.mxu0 %v396
    %915 = vmatpush.msra.mxu0 %v395
    %916 = vmatpush.msra.mxu0 %v394
    %917 = vmatpush.msra.mxu0 %v393
    %918 = vmatpush.msra.mxu0 %v392
    %919 = vmatpush.msra.mxu0 %v391
    %920 = vmatpush.msra.mxu0 %v390
    %921 = vmatpush.msra.mxu0 %v389
    %922 = vmatpush.msra.mxu0 %v388
    %923 = vmatpush.msra.mxu0 %v387
    %924 = vmatmul.f32.gmra.mxu0 %v499
    %v925 = vpop.f32.mrf.mxu0
    %v926 = vadd.f32 %v906, %v925
    %927 = vdwg.mxu0
    %928 = vmatpush.msra.mxu0 %v418
    %929 = vmatpush.msra.mxu0 %v417
    %930 = vmatpush.msra.mxu0 %v416
    %931 = vmatpush.msra.mxu0 %v415
    %932 = vmatpush.msra.mxu0 %v414
    %933 = vmatpush.msra.mxu0 %v413
    %934 = vmatpush.msra.mxu0 %v412
    %935 = vmatpush.msra.mxu0 %v411
    %936 = vmatpush.msra.mxu0 %v410
    %937 = vmatpush.msra.mxu0 %v409
    %938 = vmatpush.msra.mxu0 %v408
    %939 = vmatpush.msra.mxu0 %v407
    %940 = vmatpush.msra.mxu0 %v406
    %941 = vmatpush.msra.mxu0 %v405
    %942 = vmatpush.msra.mxu0 %v404
    %943 = vmatpush.msra.mxu0 %v403
    %944 = vmatmul.f32.gmra.mxu0 %v500
    %v945 = vpop.f32.mrf.mxu0
    %v946 = vadd.f32 %v926, %v945
    %947 = vdwg.mxu0
    %948 = vmatpush.msra.mxu0 %v434
    %949 = vmatpush.msra.mxu0 %v433
    %950 = vmatpush.msra.mxu0 %v432
    %951 = vmatpush.msra.mxu0 %v431
    %952 = vmatpush.msra.mxu0 %v430
    %953 = vmatpush.msra.mxu0 %v429
    %954 = vmatpush.msra.mxu0 %v428
    %955 = vmatpush.msra.mxu0 %v427
    %956 = vmatpush.msra.mxu0 %v426
    %957 = vmatpush.msra.mxu0 %v425
    %958 = vmatpush.msra.mxu0 %v424
    %959 = vmatpush.msra.mxu0 %v423
    %960 = vmatpush.msra.mxu0 %v422
    %961 = vmatpush.msra.mxu0 %v421
    %962 = vmatpush.msra.mxu0 %v420
    %963 = vmatpush.msra.mxu0 %v419
    %964 = vmatmul.f32.gmra.mxu0 %v501
    %v965 = vpop.f32.mrf.mxu0
    %v966 = vadd.f32 %v946, %v965
    %967 = vdwg.mxu0
    %968 = vmatpush.msra.mxu0 %v450
    %969 = vmatpush.msra.mxu0 %v449
    %970 = vmatpush.msra.mxu0 %v448
    %971 = vmatpush.msra.mxu0 %v447
    %972 = vmatpush.msra.mxu0 %v446
    %973 = vmatpush.msra.mxu0 %v445
    %974 = vmatpush.msra.mxu0 %v444
    %975 = vmatpush.msra.mxu0 %v443
    %976 = vmatpush.msra.mxu0 %v442
    %977 = vmatpush.msra.mxu0 %v441
    %978 = vmatpush.msra.mxu0 %v440
    %979 = vmatpush.msra.mxu0 %v439
    %980 = vmatpush.msra.mxu0 %v438
    %981 = vmatpush.msra.mxu0 %v437
    %982 = vmatpush.msra.mxu0 %v436
    %983 = vmatpush.msra.mxu0 %v435
    %984 = vmatmul.f32.gmra.mxu0 %v502
    %v985 = vpop.f32.mrf.mxu0
    %v986 = vadd.f32 %v966, %v985
    %987 = vdwg.mxu0
    %988 = vmatpush.msra.mxu0 %v466
    %989 = vmatpush.msra.mxu0 %v465
    %990 = vmatpush.msra.mxu0 %v464
    %991 = vmatpush.msra.mxu0 %v463
    %992 = vmatpush.msra.mxu0 %v462
    %993 = vmatpush.msra.mxu0 %v461
    %994 = vmatpush.msra.mxu0 %v460
    %995 = vmatpush.msra.mxu0 %v459
    %996 = vmatpush.msra.mxu0 %v458
    %997 = vmatpush.msra.mxu0 %v457
    %998 = vmatpush.msra.mxu0 %v456
    %999 = vmatpush.msra.mxu0 %v455
    %1000 = vmatpush.msra.mxu0 %v454
    %1001 = vmatpush.msra.mxu0 %v453
    %1002 = vmatpush.msra.mxu0 %v452
    %1003 = vmatpush.msra.mxu0 %v451
    %1004 = vmatmul.f32.gmra.mxu0 %v503
    %v1005 = vpop.f32.mrf.mxu0
    %v1006 = vadd.f32 %v986, %v1005
    %1007 = vdwg.mxu0
    %v1008 = vld [vmem:[#allocation7] sm:$0x3]
    %v1009 = vld [vmem:[#allocation8] sm:$0xff]
    %v1010 = vld [vmem:[#allocation8 + $0x8] sm:$0xff]
    %v1011 = vld [vmem:[#allocation8 + $0x10] sm:$0xff]
    %v1012 = vld [vmem:[#allocation8 + $0x18] sm:$0xff]
    %v1013 = vld [vmem:[#allocation8 + $0x20] sm:$0xff]
    %v1014 = vld [vmem:[#allocation8 + $0x28] sm:$0xff]
    %v1015 = vld [vmem:[#allocation8 + $0x30] sm:$0xff]
    %v1016 = vld [vmem:[#allocation8 + $0x38] sm:$0xff]
    %v1017 = vld [vmem:[#allocation8 + $0x40] sm:$0xff]
    %v1018 = vld [vmem:[#allocation8 + $0x48] sm:$0xff]
    %v1019 = vld [vmem:[#allocation8 + $0x50] sm:$0xff]
    %v1020 = vld [vmem:[#allocation8 + $0x58] sm:$0xff]
    %v1021 = vld [vmem:[#allocation8 + $0x60] sm:$0xff]
    %v1022 = vld [vmem:[#allocation8 + $0x68] sm:$0xff]
    %v1023 = vld [vmem:[#allocation8 + $0x70] sm:$0xff]
    %v1024 = vld [vmem:[#allocation8 + $0x78] sm:$0xff]
    %1025 = vmatpush.msra.mxu0 %v1024
    %1026 = vmatpush.msra.mxu0 %v1023
    %1027 = vmatpush.msra.mxu0 %v1022
    %1028 = vmatpush.msra.mxu0 %v1021
    %1029 = vmatpush.msra.mxu0 %v1020
    %1030 = vmatpush.msra.mxu0 %v1019
    %1031 = vmatpush.msra.mxu0 %v1018
    %1032 = vmatpush.msra.mxu0 %v1017
    %1033 = vmatpush.msra.mxu0 %v1016
    %1034 = vmatpush.msra.mxu0 %v1015
    %1035 = vmatpush.msra.mxu0 %v1014
    %1036 = vmatpush.msra.mxu0 %v1013
    %1037 = vmatpush.msra.mxu0 %v1012
    %1038 = vmatpush.msra.mxu0 %v1011
    %1039 = vmatpush.msra.mxu0 %v1010
    %1040 = vmatpush.msra.mxu0 %v1009
    %1041 = vmatmul.f32.gmra.mxu0 %v1008
    %v1042 = vpop.f32.mrf.mxu0
    %v1043 = vadd.f32 0.0, %v1042
    %1044 = vdwg.mxu0
    %v1045 = vmul.f32 %v1006, %v1006
    %vm1046 = vcmask 1041408
    %v1047 = vsel %vm1046, %v1045, 0.0
    %1048 = vadd.xlane.f32.xlu0 %v1047
    %v1049 = vpop.xlane.xlu0 %1048
    %v1050 = vadd.f32 %v1049, 1e-12
    %v1051 = vrsqrt.pop %v1050
    %v1052 = vmul.f32 %v1051, %v1050
    %v1053 = vmul.f32 %v1052, %v1051
    %v1054 = vmul.f32 0.5, %v1053
    %v1055 = vsub.f32 1.5, %v1054
    %v1056 = vmul.f32 %v1051, %v1055
    %vm1057 = vweird.f32 %v1050
    %vm1058 = vweird.f32 %v1051
    %vm1059 = vmor %vm1057, %vm1058
    %v1060 = vsel %vm1059, %v1051, %v1056
    %v1061 = vmul.f32 %v1006, %v1060
    %v1062 = vmul.f32 %v1043, %v1043
    %v1063 = vsel %vm1046, %v1062, 0.0
    %1064 = vadd.xlane.f32.xlu0 %v1063
    %v1065 = vpop.xlane.xlu0 %1064
    %v1066 = vadd.f32 %v1065, 1e-12
    %v1067 = vrsqrt.pop %v1066
    %v1068 = vmul.f32 %v1067, %v1066
    %v1069 = vmul.f32 %v1068, %v1067
    %v1070 = vmul.f32 0.5, %v1069
    %v1071 = vsub.f32 1.5, %v1070
    %v1072 = vmul.f32 %v1067, %v1071
    %vm1073 = vweird.f32 %v1066
    %vm1074 = vweird.f32 %v1067
    %vm1075 = vmor %vm1073, %vm1074
    %v1076 = vsel %vm1075, %v1067, %v1072
    %v1077 = vmul.f32 %v1043, %v1076
    %1078 = vmatpush.xpose.msra.mxu0 0.0
    %1079 = vmatpush.xpose.msra.mxu0 0.0
    %1080 = vmatpush.xpose.msra.mxu0 0.0
    %1081 = vmatpush.xpose.msra.mxu0 0.0
    %1082 = vmatpush.xpose.msra.mxu0 0.0
    %1083 = vmatpush.xpose.msra.mxu0 0.0
    %1084 = vmatpush.xpose.msra.mxu0 0.0
    %1085 = vmatpush.xpose.msra.mxu0 0.0
    %1086 = vmatpush.xpose.msra.mxu0 0.0
    %1087 = vmatpush.xpose.msra.mxu0 0.0
    %1088 = vmatpush.xpose.msra.mxu0 0.0
    %1089 = vmatpush.xpose.msra.mxu0 0.0
    %1090 = vmatpush.xpose.msra.mxu0 0.0
    %1091 = vmatpush.xpose.msra.mxu0 0.0
    %1092 = vmatpush.xpose.msra.mxu0 0.0
    %1093 = vmatpush.xpose.msra.mxu0 %v1077
    %1094 = vmatmul.f32.gmra.mxu0 %v1061
    %v1095 = vpop.f32.mrf.mxu0
    %v1096 = vadd.f32 0.0, %v1095
    %1097 = vdwg.mxu0
    %v1098 = vsub.f32 1.0, %v1096
    %vm1099 = vcmask 9216
    %v1100 = vsel %vm1099, %v1098, 0.0
    %1101 = vadd.xlane.f32.xlu0 %v1100
    %v1102 = vpop.xlane.xlu0 %1101
    %v1103 = vrot.slane %v1102, 4
    %v1104 = vadd.f32 %v1102, %v1103
    %v1105 = vrot.slane %v1104, 2
    %v1106 = vadd.f32 %v1104, %v1105
    %v1107 = vrot.slane %v1106, 1
    %v1108 = vadd.f32 %v1106, %v1107
    %s1109 = vtos %v1108
    %v1110 = vrcp.pop 4.0
    %v1111 = vmul.f32 4.0, %v1110
    %v1112 = vsub.f32 1.0, %v1111
    %v1113 = vmul.f32 %v1110, %v1112
    %v1114 = vadd.f32 %v1110, %v1113
    %vm1115 = vweird.f32 %v1110
    %v1116 = vsel %vm1115, %v1110, %v1114
    %s1117 = vtos %v1116
    %s1118 = smul.f32 %s1109, %s1117
    %s1119 = scalar_lea.smem [#allocation10], 0
    %1120 = sst [smem:[%s1119]] %s1118
    // Predicated region
    $region34: #{tpu_custom_call.1} parent=1 // pred_check
      _
    $region35: #{tpu_custom_call.1} parent=1 // pred_check_branch
      %1122 = sbr.rel (0) target = $region37
    $region36: #{tpu_custom_call.1} parent=1 // pred_region
      %1124 = vsyncadd [#allocation4], 0
      %s1126 = sshll.u32 %s4, 4
      %s1127 = int_to_ptr.hbm [resolvable:$true] %s1126
      %1129 = dma.smem_to_hbm [#allocation10], 16, %s1127, [#allocation4]
    $region37: #{tpu_custom_call.1} parent=1 // pred_fallthru
      _
    // Predicated region
    $region38: #{tpu_custom_call.1} parent=1 // pred_check
      _
    $region39: #{tpu_custom_call.1} parent=1 // pred_check_branch
      %1131 = sbr.rel (0) target = $region41
    $region40: #{tpu_custom_call.1} parent=1 // pred_region
      %1133 = dma.done [#allocation4], 16
    $region41: #{tpu_custom_call.1} parent=1 // pred_fallthru
      _
    %1134 = sfence
    %1135 = vsyncpa [#allocation3], 1
    %1136 = vsyncpa [#allocation6], 1
    %1137 = vsyncpa [#allocation9], 1
    %1138 = vsyncpa [#allocation4], 1

</llo_original>
